<compile_context>
chip_gen: v6e
topology: v6e:2x2x1
jax: 0.10.0
libtpu: 0.0.40
codegen_flags: <defaults>
</compile_context>

<pallas_src>
import jax
import jax.numpy as jnp
from jax import lax
from jax.experimental import pallas as pl
from jax.experimental.pallas import tpu as pltpu


# ----------------------------- Pallas kernel -------------------------------

def _fusion_kernel(x1_ref, x2_ref, m1_ref, s1_ref, b1_ref, m2_ref, s2_ref,
                   b2_ref, o_ref):
    """One batch element.  Row layout: value[y, x*C + c] == NHWC[y, x, c]."""
    H = x1_ref.shape[1]
    WCmid = m1_ref.shape[2]
    WCout = m2_ref.shape[2]

    def shift_rows(v, off):
        # Row y of the result holds row (y + off) of v, zero-filled at the
        # edges (implements the vertical 1-pixel zero padding of the conv).
        if off == 0:
            return v
        zero = jnp.zeros((1, v.shape[1]), v.dtype)
        if off < 0:
            return jnp.concatenate([zero, v[:-1, :]], axis=0)
        return jnp.concatenate([v[1:, :], zero], axis=0)

    # In-kernel channel concat (== torch.cat(dim=1)); column layout matches
    # the stacked [M1a; M1b] weight matrix built in the wrapper.
    x = jnp.concatenate([x1_ref[0], x2_ref[0]], axis=-1)       # (H, W*Cin) bf16

    # ---- conv1: 3 block-tridiagonal matmuls (one per dy tap), f32 accum ----
    acc1 = jnp.zeros((H, WCmid), jnp.float32)
    for d in range(3):
        acc1 = acc1 + jnp.dot(shift_rows(x, d - 1), m1_ref[d],
                              preferred_element_type=jnp.float32)
    # folded BatchNorm (eval) + ReLU in f32; bf16 for the next MXU pass.
    h1 = jnp.maximum(acc1 * s1_ref[...] + b1_ref[...], 0.0).astype(jnp.bfloat16)

    # ---- conv2 ----
    acc2 = jnp.zeros((H, WCout), jnp.float32)
    for d in range(3):
        acc2 = acc2 + jnp.dot(shift_rows(h1, d - 1), m2_ref[d],
                              preferred_element_type=jnp.float32)
    h2 = jnp.maximum(acc2 * s2_ref[...] + b2_ref[...], 0.0)

    o_ref[0] = h2.astype(o_ref.dtype)                 # (H, W*Cout), lane-dense


# ------------------------------- wrapper ------------------------------------

def _band_matrices(w, W):
    """w: (3, 3, Ci, Co) HWIO 3x3 kernel -> M: (3, W*Ci, W*Co).

    M[d, xi*Ci + ci, xo*Co + co] = w[d, xi - xo + 1, ci, co] for |xi - xo| <= 1
    (block-tridiagonal).  `row @ M[d]` applies all three dx taps of vertical
    tap dy=d, including the horizontal zero padding (out-of-range dx simply
    has no band entry)."""
    _, _, Ci, Co = w.shape
    M = jnp.zeros((3, W * Ci, W * Co), jnp.float32)
    for dx in range(3):
        for xo in range(W):
            xi = xo + dx - 1
            if 0 <= xi < W:
                M = M.at[:, xi * Ci:(xi + 1) * Ci,
                         xo * Co:(xo + 1) * Co].set(w[:, dx])
    return M


def fusion_module_forward(x1_nchw, x2_nchw, params):
    """FusionModule.forward.  Inputs/outputs are NCHW (PyTorch convention)."""
    w1, s1, b1, w2, s2, b2 = params
    N, C1, H, W = x1_nchw.shape
    C2 = x2_nchw.shape[1]
    Cin = C1 + C2
    Cmid = w1.shape[-1]
    Cout = w2.shape[-1]

    # NCHW -> NHWC -> lane-dense (N, H, W*C) row layout, bf16 for the MXU.
    x1r = jnp.transpose(x1_nchw, (0, 2, 3, 1)).reshape(N, H, W * C1)
    x2r = jnp.transpose(x2_nchw, (0, 2, 3, 1)).reshape(N, H, W * C2)
    x1r = x1r.astype(jnp.bfloat16)
    x2r = x2r.astype(jnp.bfloat16)

    # Band (block-tridiagonal) weight matrices.  The channel concat of
    # torch.cat(dim=1) is folded in by stacking the x1/x2 halves along K.
    m1 = jnp.concatenate([_band_matrices(w1[:, :, :C1, :], W),
                          _band_matrices(w1[:, :, C1:, :], W)],
                         axis=1).astype(jnp.bfloat16)          # (3, W*Cin, W*Cmid)
    m2 = _band_matrices(w2, W).astype(jnp.bfloat16)            # (3, W*Cmid, W*Cout)

    # Folded BN scale/bias broadcast to the (W*C) row layout (kept f32).
    s1r = jnp.tile(s1.reshape(1, Cmid), (1, W)).astype(jnp.float32)
    b1r = jnp.tile(b1.reshape(1, Cmid), (1, W)).astype(jnp.float32)
    s2r = jnp.tile(s2.reshape(1, Cout), (1, W)).astype(jnp.float32)
    b2r = jnp.tile(b2.reshape(1, Cout), (1, W)).astype(jnp.float32)

    out_rows = pl.pallas_call(
        _fusion_kernel,
        out_shape=jax.ShapeDtypeStruct((N, H, W * Cout), jnp.float32),
        grid_spec=pltpu.PrefetchScalarGridSpec(
            num_scalar_prefetch=0,
            grid=(N,),
            in_specs=[
                pl.BlockSpec((1, H, W * C1), lambda n: (n, 0, 0)),
                pl.BlockSpec((1, H, W * C2), lambda n: (n, 0, 0)),
                pl.BlockSpec((3, W * Cin, W * Cmid), lambda n: (0, 0, 0)),
                pl.BlockSpec((1, W * Cmid), lambda n: (0, 0)),
                pl.BlockSpec((1, W * Cmid), lambda n: (0, 0)),
                pl.BlockSpec((3, W * Cmid, W * Cout), lambda n: (0, 0, 0)),
                pl.BlockSpec((1, W * Cout), lambda n: (0, 0)),
                pl.BlockSpec((1, W * Cout), lambda n: (0, 0)),
            ],
            out_specs=pl.BlockSpec((1, H, W * Cout), lambda n: (n, 0, 0)),
        ),
        compiler_params=pltpu.CompilerParams(
            dimension_semantics=("parallel",)),
    )(x1r, x2r, m1, s1r, b1r, m2, s2r, b2r)

    # (N, H, W*Cout) -> NHWC -> NCHW (layout plumbing outside the kernel).
    out_nhwc = out_rows.reshape(N, H, W, Cout)
    return jnp.transpose(out_nhwc, (0, 3, 1, 2))


# --------------------------- params / reference -----------------------------

def make_params(key, in_ch, out_ch, eps=1e-5):
    """Deterministic synthetic params.  Conv weights are HWIO.  BatchNorm
    (eval) + conv bias are folded into per-channel (scale, bias)."""
    ks = jax.random.split(key, 12)

    def bn_fold(conv_b, gamma, beta, mean, var):
        scale = gamma * lax.rsqrt(var + eps)
        bias = (conv_b - mean) * scale + beta
        return scale.reshape(1, -1), bias.reshape(1, -1)

    w1 = 0.1 * jax.random.normal(ks[0], (3, 3, in_ch, out_ch), jnp.float32)
    cb1 = 0.1 * jax.random.normal(ks[1], (out_ch,), jnp.float32)
    g1 = 1.0 + 0.1 * jax.random.normal(ks[2], (out_ch,), jnp.float32)
    be1 = 0.1 * jax.random.normal(ks[3], (out_ch,), jnp.float32)
    m1 = 0.05 * jax.random.normal(ks[4], (out_ch,), jnp.float32)
    v1 = 1.0 + 0.1 * jax.random.uniform(ks[5], (out_ch,), jnp.float32)

    w2 = 0.1 * jax.random.normal(ks[6], (3, 3, out_ch, out_ch), jnp.float32)
    cb2 = 0.1 * jax.random.normal(ks[7], (out_ch,), jnp.float32)
    g2 = 1.0 + 0.1 * jax.random.normal(ks[8], (out_ch,), jnp.float32)
    be2 = 0.1 * jax.random.normal(ks[9], (out_ch,), jnp.float32)
    m2 = 0.05 * jax.random.normal(ks[10], (out_ch,), jnp.float32)
    v2 = 1.0 + 0.1 * jax.random.uniform(ks[11], (out_ch,), jnp.float32)

    s1, b1 = bn_fold(cb1, g1, be1, m1, v1)
    s2, b2 = bn_fold(cb2, g2, be2, m2, v2)
    return (w1, s1, b1, w2, s2, b2)


def _reference_forward(x1_nchw, x2_nchw, params):
    """Pure-JAX reference (lax conv).  Mirrors the kernel's precision policy
    (bf16 activations/weights on the MXU, f32 accumulation and epilogue)."""
    w1, s1, b1, w2, s2, b2 = params
    q = lambda a: a.astype(jnp.bfloat16).astype(jnp.float32)
    x1 = jnp.transpose(x1_nchw, (0, 2, 3, 1))
    x2 = jnp.transpose(x2_nchw, (0, 2, 3, 1))
    x = q(jnp.concatenate([x1, x2], axis=-1))
    dn = ('NHWC', 'HWIO', 'NHWC')
    h = lax.conv_general_dilated(x, q(w1), (1, 1), 'SAME', dimension_numbers=dn,
                                 precision=lax.Precision.HIGHEST)
    h = jnp.maximum(h * s1.reshape(1, 1, 1, -1) + b1.reshape(1, 1, 1, -1), 0.0)
    h = q(h)  # kernel hands bf16 activations to the second conv
    h = lax.conv_general_dilated(h, q(w2), (1, 1), 'SAME', dimension_numbers=dn,
                                 precision=lax.Precision.HIGHEST)
    h = jnp.maximum(h * s2.reshape(1, 1, 1, -1) + b2.reshape(1, 1, 1, -1), 0.0)
    return jnp.transpose(h, (0, 3, 1, 2))


# --------------------------------- main --------------------------------------

if __name__ == "__main__":
    key = jax.random.PRNGKey(0)
    k1, k2, kp = jax.random.split(key, 3)

    N, C_half, H, W = 2, 4, 16, 16          # x1, x2: (2, 4, 16, 16) NCHW
    in_ch = 2 * C_half                       # concat -> 8 channels
    out_ch = 8                               # W*out_ch = 128 (lane-dense)

    x1 = jax.random.normal(k1, (N, C_half, H, W), jnp.float32)
    x2 = jax.random.normal(k2, (N, C_half, H, W), jnp.float32)
    params = make_params(kp, in_ch, out_ch)

    out = jax.block_until_ready(fusion_module_forward(x1, x2, params))
    ref = jax.block_until_ready(_reference_forward(x1, x2, params))

    assert out.shape == (N, out_ch, H, W), out.shape
    max_err = float(jnp.max(jnp.abs(out - ref)))
    assert jnp.allclose(out, ref, atol=1e-2, rtol=1e-2), max_err

    print("KERNEL_OK")
</pallas_src>

<mosaic_0001>
module attributes {stable_mosaic.version = 11 : i64} {
  func.func @_fusion_kernel(%arg0: i32, %arg1: memref<1x16x64xbf16, #tpu.memory_space<vmem>>, %arg2: memref<1x16x64xbf16, #tpu.memory_space<vmem>>, %arg3: memref<3x128x128xbf16, #tpu.memory_space<vmem>>, %arg4: memref<1x128xf32, #tpu.memory_space<vmem>>, %arg5: memref<1x128xf32, #tpu.memory_space<vmem>>, %arg6: memref<3x128x128xbf16, #tpu.memory_space<vmem>>, %arg7: memref<1x128xf32, #tpu.memory_space<vmem>>, %arg8: memref<1x128xf32, #tpu.memory_space<vmem>>, %arg9: memref<1x16x128xf32, #tpu.memory_space<vmem>>) attributes {dimension_semantics = [#tpu.dimension_semantics<parallel>], iteration_bounds = array<i64: 2>, scalar_prefetch = 0 : i64, scratch_operands = 0 : i64, tpu.core_type = #tpu.core_type<tc>, window_params = [{transform_indices = @transform_0, window_bounds = array<i64: 1, 16, 64>}, {transform_indices = @transform_1, window_bounds = array<i64: 1, 16, 64>}, {pipeline_mode = #tpu.pipeline_mode<synchronous>, transform_indices = @transform_2, window_bounds = array<i64: 3, 128, 128>}, {pipeline_mode = #tpu.pipeline_mode<synchronous>, transform_indices = @transform_3, window_bounds = array<i64: 1, 128>}, {pipeline_mode = #tpu.pipeline_mode<synchronous>, transform_indices = @transform_4, window_bounds = array<i64: 1, 128>}, {pipeline_mode = #tpu.pipeline_mode<synchronous>, transform_indices = @transform_5, window_bounds = array<i64: 3, 128, 128>}, {pipeline_mode = #tpu.pipeline_mode<synchronous>, transform_indices = @transform_6, window_bounds = array<i64: 1, 128>}, {pipeline_mode = #tpu.pipeline_mode<synchronous>, transform_indices = @transform_7, window_bounds = array<i64: 1, 128>}, {transform_indices = @transform_8, window_bounds = array<i64: 1, 16, 128>}]} {
    %c0 = arith.constant 0 : index
    %c0_0 = arith.constant 0 : index
    %c0_1 = arith.constant 0 : index
    %0 = vector.load %arg1[%c0, %c0_0, %c0_1] : memref<1x16x64xbf16, #tpu.memory_space<vmem>>, vector<1x16x64xbf16>
    %1 = vector.shape_cast %0 : vector<1x16x64xbf16> to vector<16x64xbf16>
    %c0_2 = arith.constant 0 : index
    %c0_3 = arith.constant 0 : index
    %c0_4 = arith.constant 0 : index
    %2 = vector.load %arg2[%c0_2, %c0_3, %c0_4] : memref<1x16x64xbf16, #tpu.memory_space<vmem>>, vector<1x16x64xbf16>
    %3 = vector.shape_cast %2 : vector<1x16x64xbf16> to vector<16x64xbf16>
    %4 = tpu.concatenate %1, %3 in 1 : vector<16x64xbf16>, vector<16x64xbf16> -> vector<16x128xbf16>
    %cst = arith.constant 0.000000e+00 : f32
    %5 = vector.broadcast %cst : f32 to vector<16x128xf32>
    %cst_5 = arith.constant 0.000000e+00 : bf16
    %6 = vector.broadcast %cst_5 : bf16 to vector<1x128xbf16>
    %7 = vector.extract_strided_slice %4 {offsets = [0, 0], sizes = [15, 128], strides = [1, 1]} : vector<16x128xbf16> to vector<15x128xbf16>
    %8 = tpu.concatenate %6, %7 in 0 : vector<1x128xbf16>, vector<15x128xbf16> -> vector<16x128xbf16>
    %c0_6 = arith.constant 0 : index
    %c0_7 = arith.constant 0 : index
    %c0_8 = arith.constant 0 : index
    %9 = vector.load %arg3[%c0_6, %c0_7, %c0_8] : memref<3x128x128xbf16, #tpu.memory_space<vmem>>, vector<1x128x128xbf16>
    %10 = vector.shape_cast %9 : vector<1x128x128xbf16> to vector<128x128xbf16>
    %cst_9 = arith.constant dense<0.000000e+00> : vector<16x128xf32>
    %11 = tpu.matmul %8, %10, %cst_9 {dimension_numbers = #tpu.dot_dimension_numbers<[1], [0], [0], [1], [0, 0, 1, 1], [], []>} : vector<16x128xbf16>, vector<128x128xbf16>, vector<16x128xf32> -> vector<16x128xf32>
    %12 = arith.addf %5, %11 : vector<16x128xf32>
    %c1 = arith.constant 1 : index
    %c0_10 = arith.constant 0 : index
    %c0_11 = arith.constant 0 : index
    %13 = vector.load %arg3[%c1, %c0_10, %c0_11] : memref<3x128x128xbf16, #tpu.memory_space<vmem>>, vector<1x128x128xbf16>
    %14 = vector.shape_cast %13 : vector<1x128x128xbf16> to vector<128x128xbf16>
    %cst_12 = arith.constant dense<0.000000e+00> : vector<16x128xf32>
    %15 = tpu.matmul %4, %14, %cst_12 {dimension_numbers = #tpu.dot_dimension_numbers<[1], [0], [0], [1], [0, 0, 1, 1], [], []>} : vector<16x128xbf16>, vector<128x128xbf16>, vector<16x128xf32> -> vector<16x128xf32>
    %16 = arith.addf %12, %15 : vector<16x128xf32>
    %cst_13 = arith.constant 0.000000e+00 : bf16
    %17 = vector.broadcast %cst_13 : bf16 to vector<1x128xbf16>
    %18 = vector.extract_strided_slice %4 {offsets = [1, 0], sizes = [15, 128], strides = [1, 1]} : vector<16x128xbf16> to vector<15x128xbf16>
    %19 = tpu.concatenate %18, %17 in 0 : vector<15x128xbf16>, vector<1x128xbf16> -> vector<16x128xbf16>
    %c2 = arith.constant 2 : index
    %c0_14 = arith.constant 0 : index
    %c0_15 = arith.constant 0 : index
    %20 = vector.load %arg3[%c2, %c0_14, %c0_15] : memref<3x128x128xbf16, #tpu.memory_space<vmem>>, vector<1x128x128xbf16>
    %21 = vector.shape_cast %20 : vector<1x128x128xbf16> to vector<128x128xbf16>
    %cst_16 = arith.constant dense<0.000000e+00> : vector<16x128xf32>
    %22 = tpu.matmul %19, %21, %cst_16 {dimension_numbers = #tpu.dot_dimension_numbers<[1], [0], [0], [1], [0, 0, 1, 1], [], []>} : vector<16x128xbf16>, vector<128x128xbf16>, vector<16x128xf32> -> vector<16x128xf32>
    %23 = arith.addf %16, %22 : vector<16x128xf32>
    %c0_17 = arith.constant 0 : index
    %c0_18 = arith.constant 0 : index
    %24 = vector.load %arg4[%c0_17, %c0_18] : memref<1x128xf32, #tpu.memory_space<vmem>>, vector<1x128xf32>
    %25 = vector.broadcast %24 : vector<1x128xf32> to vector<16x128xf32>
    %26 = arith.mulf %23, %25 : vector<16x128xf32>
    %c0_19 = arith.constant 0 : index
    %c0_20 = arith.constant 0 : index
    %27 = vector.load %arg5[%c0_19, %c0_20] : memref<1x128xf32, #tpu.memory_space<vmem>>, vector<1x128xf32>
    %28 = vector.broadcast %27 : vector<1x128xf32> to vector<16x128xf32>
    %29 = arith.addf %26, %28 : vector<16x128xf32>
    %cst_21 = arith.constant 0.000000e+00 : f32
    %30 = vector.broadcast %cst_21 : f32 to vector<16x128xf32>
    %31 = arith.maximumf %29, %30 : vector<16x128xf32>
    %32 = arith.truncf %31 : vector<16x128xf32> to vector<16x128xbf16>
    %cst_22 = arith.constant 0.000000e+00 : f32
    %33 = vector.broadcast %cst_22 : f32 to vector<16x128xf32>
    %cst_23 = arith.constant 0.000000e+00 : bf16
    %34 = vector.broadcast %cst_23 : bf16 to vector<1x128xbf16>
    %35 = vector.extract_strided_slice %32 {offsets = [0, 0], sizes = [15, 128], strides = [1, 1]} : vector<16x128xbf16> to vector<15x128xbf16>
    %36 = tpu.concatenate %34, %35 in 0 : vector<1x128xbf16>, vector<15x128xbf16> -> vector<16x128xbf16>
    %c0_24 = arith.constant 0 : index
    %c0_25 = arith.constant 0 : index
    %c0_26 = arith.constant 0 : index
    %37 = vector.load %arg6[%c0_24, %c0_25, %c0_26] : memref<3x128x128xbf16, #tpu.memory_space<vmem>>, vector<1x128x128xbf16>
    %38 = vector.shape_cast %37 : vector<1x128x128xbf16> to vector<128x128xbf16>
    %cst_27 = arith.constant dense<0.000000e+00> : vector<16x128xf32>
    %39 = tpu.matmul %36, %38, %cst_27 {dimension_numbers = #tpu.dot_dimension_numbers<[1], [0], [0], [1], [0, 0, 1, 1], [], []>} : vector<16x128xbf16>, vector<128x128xbf16>, vector<16x128xf32> -> vector<16x128xf32>
    %40 = arith.addf %33, %39 : vector<16x128xf32>
    %c1_28 = arith.constant 1 : index
    %c0_29 = arith.constant 0 : index
    %c0_30 = arith.constant 0 : index
    %41 = vector.load %arg6[%c1_28, %c0_29, %c0_30] : memref<3x128x128xbf16, #tpu.memory_space<vmem>>, vector<1x128x128xbf16>
    %42 = vector.shape_cast %41 : vector<1x128x128xbf16> to vector<128x128xbf16>
    %cst_31 = arith.constant dense<0.000000e+00> : vector<16x128xf32>
    %43 = tpu.matmul %32, %42, %cst_31 {dimension_numbers = #tpu.dot_dimension_numbers<[1], [0], [0], [1], [0, 0, 1, 1], [], []>} : vector<16x128xbf16>, vector<128x128xbf16>, vector<16x128xf32> -> vector<16x128xf32>
    %44 = arith.addf %40, %43 : vector<16x128xf32>
    %cst_32 = arith.constant 0.000000e+00 : bf16
    %45 = vector.broadcast %cst_32 : bf16 to vector<1x128xbf16>
    %46 = vector.extract_strided_slice %32 {offsets = [1, 0], sizes = [15, 128], strides = [1, 1]} : vector<16x128xbf16> to vector<15x128xbf16>
    %47 = tpu.concatenate %46, %45 in 0 : vector<15x128xbf16>, vector<1x128xbf16> -> vector<16x128xbf16>
    %c2_33 = arith.constant 2 : index
    %c0_34 = arith.constant 0 : index
    %c0_35 = arith.constant 0 : index
    %48 = vector.load %arg6[%c2_33, %c0_34, %c0_35] : memref<3x128x128xbf16, #tpu.memory_space<vmem>>, vector<1x128x128xbf16>
    %49 = vector.shape_cast %48 : vector<1x128x128xbf16> to vector<128x128xbf16>
    %cst_36 = arith.constant dense<0.000000e+00> : vector<16x128xf32>
    %50 = tpu.matmul %47, %49, %cst_36 {dimension_numbers = #tpu.dot_dimension_numbers<[1], [0], [0], [1], [0, 0, 1, 1], [], []>} : vector<16x128xbf16>, vector<128x128xbf16>, vector<16x128xf32> -> vector<16x128xf32>
    %51 = arith.addf %44, %50 : vector<16x128xf32>
    %c0_37 = arith.constant 0 : index
    %c0_38 = arith.constant 0 : index
    %52 = vector.load %arg7[%c0_37, %c0_38] : memref<1x128xf32, #tpu.memory_space<vmem>>, vector<1x128xf32>
    %53 = vector.broadcast %52 : vector<1x128xf32> to vector<16x128xf32>
    %54 = arith.mulf %51, %53 : vector<16x128xf32>
    %c0_39 = arith.constant 0 : index
    %c0_40 = arith.constant 0 : index
    %55 = vector.load %arg8[%c0_39, %c0_40] : memref<1x128xf32, #tpu.memory_space<vmem>>, vector<1x128xf32>
    %56 = vector.broadcast %55 : vector<1x128xf32> to vector<16x128xf32>
    %57 = arith.addf %54, %56 : vector<16x128xf32>
    %cst_41 = arith.constant 0.000000e+00 : f32
    %58 = vector.broadcast %cst_41 : f32 to vector<16x128xf32>
    %59 = arith.maximumf %57, %58 : vector<16x128xf32>
    %c0_42 = arith.constant 0 : index
    %c0_43 = arith.constant 0 : index
    %c0_44 = arith.constant 0 : index
    %60 = vector.load %arg9[%c0_42, %c0_43, %c0_44] : memref<1x16x128xf32, #tpu.memory_space<vmem>>, vector<1x16x128xf32>
    %61 = vector.shape_cast %60 : vector<1x16x128xf32> to vector<16x128xf32>
    %62 = vector.shape_cast %59 : vector<16x128xf32> to vector<1x16x128xf32>
    tpu.vector_store %arg9[%c0_42, %c0_43, %c0_44], %62 {strides = array<i32>} : memref<1x16x128xf32, #tpu.memory_space<vmem>>, vector<1x16x128xf32>,
    return
  }
  func.func @transform_0(%arg0: i32) -> (i32, i32, i32) {
    %c0_i32 = arith.constant 0 : i32
    %c0_i32_0 = arith.constant 0 : i32
    %c0_i32_1 = arith.constant 0 : i32
    return %arg0, %c0_i32, %c0_i32_0 : i32, i32, i32
  }
  func.func @transform_1(%arg0: i32) -> (i32, i32, i32) {
    %c0_i32 = arith.constant 0 : i32
    %c0_i32_0 = arith.constant 0 : i32
    %c0_i32_1 = arith.constant 0 : i32
    return %arg0, %c0_i32, %c0_i32_0 : i32, i32, i32
  }
  func.func @transform_2(%arg0: i32) -> (i32, i32, i32) {
    %c0_i32 = arith.constant 0 : i32
    %c0_i32_0 = arith.constant 0 : i32
    %c0_i32_1 = arith.constant 0 : i32
    %c0_i32_2 = arith.constant 0 : i32
    return %c0_i32, %c0_i32_0, %c0_i32_1 : i32, i32, i32
  }
  func.func @transform_3(%arg0: i32) -> (i32, i32) {
    %c0_i32 = arith.constant 0 : i32
    %c0_i32_0 = arith.constant 0 : i32
    %c0_i32_1 = arith.constant 0 : i32
    return %c0_i32, %c0_i32_0 : i32, i32
  }
  func.func @transform_4(%arg0: i32) -> (i32, i32) {
    %c0_i32 = arith.constant 0 : i32
    %c0_i32_0 = arith.constant 0 : i32
    %c0_i32_1 = arith.constant 0 : i32
    return %c0_i32, %c0_i32_0 : i32, i32
  }
  func.func @transform_5(%arg0: i32) -> (i32, i32, i32) {
    %c0_i32 = arith.constant 0 : i32
    %c0_i32_0 = arith.constant 0 : i32
    %c0_i32_1 = arith.constant 0 : i32
    %c0_i32_2 = arith.constant 0 : i32
    return %c0_i32, %c0_i32_0, %c0_i32_1 : i32, i32, i32
  }
  func.func @transform_6(%arg0: i32) -> (i32, i32) {
    %c0_i32 = arith.constant 0 : i32
    %c0_i32_0 = arith.constant 0 : i32
    %c0_i32_1 = arith.constant 0 : i32
    return %c0_i32, %c0_i32_0 : i32, i32
  }
  func.func @transform_7(%arg0: i32) -> (i32, i32) {
    %c0_i32 = arith.constant 0 : i32
    %c0_i32_0 = arith.constant 0 : i32
    %c0_i32_1 = arith.constant 0 : i32
    return %c0_i32, %c0_i32_0 : i32, i32
  }
  func.func @transform_8(%arg0: i32) -> (i32, i32, i32) {
    %c0_i32 = arith.constant 0 : i32
    %c0_i32_0 = arith.constant 0 : i32
    %c0_i32_1 = arith.constant 0 : i32
    return %arg0, %c0_i32, %c0_i32_0 : i32, i32, i32
  }
}

</mosaic_0001>

<llo_original>
// kernel: tpu_custom_call.1
$region0: #{tpu_custom_call.1}
  #allocation0 [shape = 'u32[]', space=smem, size = 0x4, offset = 0x4, fixed_abs, tag = 'smem constant byte address 0x4 - core index']
  #allocation1 [shape = 'u32[144,128]{1,0:T(1,128)}', space=vmem, size = 0x12000, scoped, tag = 'internal scratch']
  %s0 = inlined_call_operand.hbm [shape: bf16[2,16,64], index: 0, kind: input, shape index: {}]
  %s1 = inlined_call_operand.hbm [shape: bf16[2,16,64], index: 1, kind: input, shape index: {}]
  %s2 = inlined_call_operand.hbm [shape: bf16[3,128,128], index: 2, kind: input, shape index: {}]
  %s3 = inlined_call_operand.vmem [shape: f32[1,128], index: 3, kind: input, shape index: {}]
  %s4 = inlined_call_operand.vmem [shape: f32[1,128], index: 4, kind: input, shape index: {}]
  %s5 = inlined_call_operand.hbm [shape: bf16[3,128,128], index: 5, kind: input, shape index: {}]
  %s6 = inlined_call_operand.vmem [shape: f32[1,128], index: 6, kind: input, shape index: {}]
  %s7 = inlined_call_operand.vmem [shape: f32[1,128], index: 7, kind: input, shape index: {}]
  %s8 = inlined_call_operand.hbm [shape: f32[2,16,128], index: 8, kind: output, shape index: {}]
  %s9 = sld [smem:[#allocation0]]
  $region81: #{tpu_custom_call.1} parent=0
    _
  %s11 = ssub.s32 1, %s9
  %s12 = scalar_select 0, %s11, %s9
  $region1: #{tpu_custom_call.1} parent=0
    #allocation2 [shape = 'u8[8192]{0}', space=vmem, size = 0x2000, scoped, tag = 'input window, operand 0']
    #allocation3 [shape = 's32[2]{0}', space=sflag, size = 0x8, scoped, tag = 'scoped memory for tpu_custom_call.1']
    #allocation4 [shape = 's32[2]{0}', space=sflag, size = 0x8, scoped, tag = 'scoped memory for tpu_custom_call.1']
    #allocation5 [shape = 'u8[8192]{0}', space=vmem, size = 0x2000, scoped, tag = 'input window, operand 1']
    #allocation6 [shape = 's32[2]{0}', space=sflag, size = 0x8, scoped, tag = 'scoped memory for tpu_custom_call.1']
    #allocation7 [shape = 'u8[98304]{0}', space=vmem, size = 0x18000, scoped, tag = 'input window, operand 2, single buffered']
    #allocation8 [shape = 'u8[98304]{0}', space=vmem, size = 0x18000, scoped, tag = 'input window, operand 5, single buffered']
    #allocation9 [shape = 's32[1]{0}', space=sflag, size = 0x4, scoped, tag = 'scoped memory for tpu_custom_call.1']
    #allocation10 [shape = 'u8[16384]{0}', space=vmem, size = 0x4000, scoped, tag = 'output window, operand 0']
    %13 = vsyncpa [#allocation3], 0
    %s14 = scalar_lea.sflag [#allocation3], 1
    %15 = vsyncpa %s14, 0
    %16 = vsyncpa [#allocation6], 0
    %s17 = scalar_lea.sflag [#allocation6], 1
    %18 = vsyncpa %s17, 0
    %19 = vsyncpa [#allocation9], 0
    %20 = vsyncpa [#allocation4], 0
    %s21 = scalar_lea.sflag [#allocation4], 1
    %22 = vsyncpa %s21, 0
    loop: start=0, step=1, limit=4
    $region2: #{tpu_custom_call.1} parent=1 // loop_pre_header
      _
    $region3: #{tpu_custom_call.1} parent=1 // loop_header
      %s24 = sphi 0, %s28
      %p25 = scmp.ge.s32.totalorder %s24, 4
      %s34 = sphi 0, %s36
      %s37 = sphi 0, %s34
      %s38 = sphi 0, %s37
      %s54 = sphi 0, %s38
      %s60 = sphi 0, %s62
      %s63 = sphi 0, %s60
      %s64 = sphi 0, %s63
      %s80 = sphi 0, %s64
      %s84 = sphi 0, %s84
      %s86 = sphi 0, %s84
      %s87 = sphi 0, %s86
      %s101 = sphi 0, %s87
      %s105 = sphi 0, %s105
      %s107 = sphi 0, %s105
      %s108 = sphi 0, %s107
      %s122 = sphi 0, %s108
      %s126 = sphi 0, %s126
      %s128 = sphi 0, %s126
      %s129 = sphi 0, %s128
      %s143 = sphi 0, %s129
      %s147 = sphi 0, %s147
      %s149 = sphi 0, %s147
      %s150 = sphi 0, %s149
      %s164 = sphi 0, %s150
      %s168 = sphi 0, %s168
      %s170 = sphi 0, %s168
      %s171 = sphi 0, %s170
      %s185 = sphi 0, %s171
      %s189 = sphi 0, %s189
      %s191 = sphi 0, %s189
      %s192 = sphi 0, %s191
      %s206 = sphi 0, %s192
      %s212 = sphi 0, %s214
      %s215 = sphi 0, %s212
      %s216 = sphi 0, %s215
      %s232 = sphi 0, %s216
    $region4: #{tpu_custom_call.1} parent=1 // loop_header_branch
      %27 = sbr.rel (%p25) target = $region8
    $region5: #{tpu_custom_call.1} parent=1 // loop_body
      %s29 = ssub.s32 %s24, 1
      %s30 = ssub.s32 %s24, 2
      %s31 = sadd.s32 %s24, 1
      %s32 = ssub.s32 %s24, %s31
      %p33 = scmp.eq.s32.totalorder %s32, 0
      %s35 = sadd.s32 %s34, 1
      %s36 = scalar_select %p33, %s34, %s35
      %p39 = pneg %p33
      %p40 = scmp.eq.s32.totalorder %s24, 1
      %p41 = por %p39, %p40
      %p42 = scmp.ne.s32.totalorder %s34, %s37
      %p43 = scmp.eq.s32.totalorder %s24, 0
      %p44 = por %p42, %p43
      %p45 = scmp.ne.s32.totalorder %s34, %s37
      %p46 = scmp.eq.s32.totalorder %s29, 1
      %p47 = por %p45, %p46
      %p48 = scmp.ne.s32.totalorder %s37, %s38
      %p49 = scmp.eq.s32.totalorder %s29, 0
      %p50 = por %p48, %p49
      %p51 = scmp.ne.s32.totalorder %s37, %s38
      %p52 = scmp.eq.s32.totalorder %s30, 1
      %p53 = por %p51, %p52
      %p55 = scmp.ne.s32.totalorder %s38, %s54
      %p56 = scmp.eq.s32.totalorder %s30, 0
      %p57 = por %p55, %p56
      %s58 = ssub.s32 %s24, %s31
      %p59 = scmp.eq.s32.totalorder %s58, 0
      %s61 = sadd.s32 %s60, 1
      %s62 = scalar_select %p59, %s60, %s61
      %p65 = pneg %p59
      %p66 = scmp.eq.s32.totalorder %s24, 1
      %p67 = por %p65, %p66
      %p68 = scmp.ne.s32.totalorder %s60, %s63
      %p69 = scmp.eq.s32.totalorder %s24, 0
      %p70 = por %p68, %p69
      %p71 = scmp.ne.s32.totalorder %s60, %s63
      %p72 = scmp.eq.s32.totalorder %s29, 1
      %p73 = por %p71, %p72
      %p74 = scmp.ne.s32.totalorder %s63, %s64
      %p75 = scmp.eq.s32.totalorder %s29, 0
      %p76 = por %p74, %p75
      %p77 = scmp.ne.s32.totalorder %s63, %s64
      %p78 = scmp.eq.s32.totalorder %s30, 1
      %p79 = por %p77, %p78
      %p81 = scmp.ne.s32.totalorder %s64, %s80
      %p82 = scmp.eq.s32.totalorder %s30, 0
      %p83 = por %p81, %p82
      %s85 = sadd.s32 %s84, 1
      %p88 = scmp.eq.s32.totalorder %s24, 1
      %p89 = scmp.ne.s32.totalorder %s84, %s86
      %p90 = scmp.eq.s32.totalorder %s24, 0
      %p91 = por %p89, %p90
      %p92 = scmp.ne.s32.totalorder %s84, %s86
      %p93 = scmp.eq.s32.totalorder %s29, 1
      %p94 = por %p92, %p93
      %p95 = scmp.ne.s32.totalorder %s86, %s87
      %p96 = scmp.eq.s32.totalorder %s29, 0
      %p97 = por %p95, %p96
      %p98 = scmp.ne.s32.totalorder %s86, %s87
      %p99 = scmp.eq.s32.totalorder %s30, 1
      %p100 = por %p98, %p99
      %p102 = scmp.ne.s32.totalorder %s87, %s101
      %p103 = scmp.eq.s32.totalorder %s30, 0
      %p104 = por %p102, %p103
      %s106 = sadd.s32 %s105, 1
      %p109 = scmp.eq.s32.totalorder %s24, 1
      %p110 = scmp.ne.s32.totalorder %s105, %s107
      %p111 = scmp.eq.s32.totalorder %s24, 0
      %p112 = por %p110, %p111
      %p113 = scmp.ne.s32.totalorder %s105, %s107
      %p114 = scmp.eq.s32.totalorder %s29, 1
      %p115 = por %p113, %p114
      %p116 = scmp.ne.s32.totalorder %s107, %s108
      %p117 = scmp.eq.s32.totalorder %s29, 0
      %p118 = por %p116, %p117
      %p119 = scmp.ne.s32.totalorder %s107, %s108
      %p120 = scmp.eq.s32.totalorder %s30, 1
      %p121 = por %p119, %p120
      %p123 = scmp.ne.s32.totalorder %s108, %s122
      %p124 = scmp.eq.s32.totalorder %s30, 0
      %p125 = por %p123, %p124
      %s127 = sadd.s32 %s126, 1
      %p130 = scmp.eq.s32.totalorder %s24, 1
      %p131 = scmp.ne.s32.totalorder %s126, %s128
      %p132 = scmp.eq.s32.totalorder %s24, 0
      %p133 = por %p131, %p132
      %p134 = scmp.ne.s32.totalorder %s126, %s128
      %p135 = scmp.eq.s32.totalorder %s29, 1
      %p136 = por %p134, %p135
      %p137 = scmp.ne.s32.totalorder %s128, %s129
      %p138 = scmp.eq.s32.totalorder %s29, 0
      %p139 = por %p137, %p138
      %p140 = scmp.ne.s32.totalorder %s128, %s129
      %p141 = scmp.eq.s32.totalorder %s30, 1
      %p142 = por %p140, %p141
      %p144 = scmp.ne.s32.totalorder %s129, %s143
      %p145 = scmp.eq.s32.totalorder %s30, 0
      %p146 = por %p144, %p145
      %s148 = sadd.s32 %s147, 1
      %p151 = scmp.eq.s32.totalorder %s24, 1
      %p152 = scmp.ne.s32.totalorder %s147, %s149
      %p153 = scmp.eq.s32.totalorder %s24, 0
      %p154 = por %p152, %p153
      %p155 = scmp.ne.s32.totalorder %s147, %s149
      %p156 = scmp.eq.s32.totalorder %s29, 1
      %p157 = por %p155, %p156
      %p158 = scmp.ne.s32.totalorder %s149, %s150
      %p159 = scmp.eq.s32.totalorder %s29, 0
      %p160 = por %p158, %p159
      %p161 = scmp.ne.s32.totalorder %s149, %s150
      %p162 = scmp.eq.s32.totalorder %s30, 1
      %p163 = por %p161, %p162
      %p165 = scmp.ne.s32.totalorder %s150, %s164
      %p166 = scmp.eq.s32.totalorder %s30, 0
      %p167 = por %p165, %p166
      %s169 = sadd.s32 %s168, 1
      %p172 = scmp.eq.s32.totalorder %s24, 1
      %p173 = scmp.ne.s32.totalorder %s168, %s170
      %p174 = scmp.eq.s32.totalorder %s24, 0
      %p175 = por %p173, %p174
      %p176 = scmp.ne.s32.totalorder %s168, %s170
      %p177 = scmp.eq.s32.totalorder %s29, 1
      %p178 = por %p176, %p177
      %p179 = scmp.ne.s32.totalorder %s170, %s171
      %p180 = scmp.eq.s32.totalorder %s29, 0
      %p181 = por %p179, %p180
      %p182 = scmp.ne.s32.totalorder %s170, %s171
      %p183 = scmp.eq.s32.totalorder %s30, 1
      %p184 = por %p182, %p183
      %p186 = scmp.ne.s32.totalorder %s171, %s185
      %p187 = scmp.eq.s32.totalorder %s30, 0
      %p188 = por %p186, %p187
      %s190 = sadd.s32 %s189, 1
      %p193 = scmp.eq.s32.totalorder %s24, 1
      %p194 = scmp.ne.s32.totalorder %s189, %s191
      %p195 = scmp.eq.s32.totalorder %s24, 0
      %p196 = por %p194, %p195
      %p197 = scmp.ne.s32.totalorder %s189, %s191
      %p198 = scmp.eq.s32.totalorder %s29, 1
      %p199 = por %p197, %p198
      %p200 = scmp.ne.s32.totalorder %s191, %s192
      %p201 = scmp.eq.s32.totalorder %s29, 0
      %p202 = por %p200, %p201
      %p203 = scmp.ne.s32.totalorder %s191, %s192
      %p204 = scmp.eq.s32.totalorder %s30, 1
      %p205 = por %p203, %p204
      %p207 = scmp.ne.s32.totalorder %s192, %s206
      %p208 = scmp.eq.s32.totalorder %s30, 0
      %p209 = por %p207, %p208
      %s210 = ssub.s32 %s24, %s31
      %p211 = scmp.eq.s32.totalorder %s210, 0
      %s213 = sadd.s32 %s212, 1
      %s214 = scalar_select %p211, %s212, %s213
      %p217 = pneg %p211
      %p218 = scmp.eq.s32.totalorder %s24, 1
      %p219 = por %p217, %p218
      %p220 = scmp.ne.s32.totalorder %s212, %s215
      %p221 = scmp.eq.s32.totalorder %s24, 0
      %p222 = por %p220, %p221
      %p223 = scmp.ne.s32.totalorder %s212, %s215
      %p224 = scmp.eq.s32.totalorder %s29, 1
      %p225 = por %p223, %p224
      %p226 = scmp.ne.s32.totalorder %s215, %s216
      %p227 = scmp.eq.s32.totalorder %s29, 0
      %p228 = por %p226, %p227
      %p229 = scmp.ne.s32.totalorder %s215, %s216
      %p230 = scmp.eq.s32.totalorder %s30, 1
      %p231 = por %p229, %p230
      %p233 = scmp.ne.s32.totalorder %s216, %s232
      %p234 = scmp.eq.s32.totalorder %s30, 0
      %p235 = por %p233, %p234
      %p236 = scmp.le.s32.totalorder 1, %s24
      %p237 = scmp.lt.s32.totalorder %s24, 3
      %p238 = pnand %p236, %p237
      %p239 = pneg %p238
      // Predicated region
      $region9: #{tpu_custom_call.1} parent=5 // pred_check
        _
      $region10: #{tpu_custom_call.1} parent=5 // pred_check_branch
        %241 = sbr.rel (%p238) target = $region12
      $region11: #{tpu_custom_call.1} parent=5 // pred_region
        %s242 = ssub.s32 %s24, 1
        // Predicated region
        $region13: #{tpu_custom_call.1} parent=11 // pred_check
          %p243 = pneg %p97
        $region14: #{tpu_custom_call.1} parent=11 // pred_check_branch
          %245 = sbr.rel (%p243) target = $region16
        $region15: #{tpu_custom_call.1} parent=11 // pred_region
          %s247 = ssub.s32 3072, 3072
          %248 = vsyncadd [#allocation6], %s247
          %s249 = sshll.u32 [#allocation7], 4
          %s250 = int_to_ptr.vmem [resolvable:$true] %s249
          %255 = dma.hbm_to_vmem [thread:$0]  %s2, 3072, %s250, [#allocation6], 64, 64, 4
        $region16: #{tpu_custom_call.1} parent=11 // pred_fallthru
          _
        // Predicated region
        $region17: #{tpu_custom_call.1} parent=11 // pred_check
          %p256 = pneg %p118
        $region18: #{tpu_custom_call.1} parent=11 // pred_check_branch
          %258 = sbr.rel (%p256) target = $region20
        $region19: #{tpu_custom_call.1} parent=11 // pred_region
          _
        $region20: #{tpu_custom_call.1} parent=11 // pred_fallthru
          _
        // Predicated region
        $region21: #{tpu_custom_call.1} parent=11 // pred_check
          %p259 = pneg %p139
        $region22: #{tpu_custom_call.1} parent=11 // pred_check_branch
          %261 = sbr.rel (%p259) target = $region24
        $region23: #{tpu_custom_call.1} parent=11 // pred_region
          _
        $region24: #{tpu_custom_call.1} parent=11 // pred_fallthru
          _
        // Predicated region
        $region25: #{tpu_custom_call.1} parent=11 // pred_check
          %p262 = pneg %p160
        $region26: #{tpu_custom_call.1} parent=11 // pred_check_branch
          %264 = sbr.rel (%p262) target = $region28
        $region27: #{tpu_custom_call.1} parent=11 // pred_region
          %s266 = ssub.s32 3072, 3072
          %267 = vsyncadd [#allocation9], %s266
          %s268 = sshll.u32 [#allocation8], 4
          %s269 = int_to_ptr.vmem [resolvable:$true] %s268
          %274 = dma.hbm_to_vmem [thread:$0]  %s5, 3072, %s269, [#allocation9], 64, 64, 4
        $region28: #{tpu_custom_call.1} parent=11 // pred_fallthru
          _
        // Predicated region
        $region29: #{tpu_custom_call.1} parent=11 // pred_check
          %p275 = pneg %p181
        $region30: #{tpu_custom_call.1} parent=11 // pred_check_branch
          %277 = sbr.rel (%p275) target = $region32
        $region31: #{tpu_custom_call.1} parent=11 // pred_region
          _
        $region32: #{tpu_custom_call.1} parent=11 // pred_fallthru
          _
        // Predicated region
        $region33: #{tpu_custom_call.1} parent=11 // pred_check
          %p278 = pneg %p202
        $region34: #{tpu_custom_call.1} parent=11 // pred_check_branch
          %280 = sbr.rel (%p278) target = $region36
        $region35: #{tpu_custom_call.1} parent=11 // pred_region
          _
        $region36: #{tpu_custom_call.1} parent=11 // pred_fallthru
          _
      $region12: #{tpu_custom_call.1} parent=5 // pred_fallthru
        _
      %p281 = scmp.lt.s32.totalorder %s24, 2
      // Predicated region
      $region37: #{tpu_custom_call.1} parent=5 // pred_check
        %p282 = pneg %p281
      $region38: #{tpu_custom_call.1} parent=5 // pred_check_branch
        %284 = sbr.rel (%p282) target = $region40
      $region39: #{tpu_custom_call.1} parent=5 // pred_region
        // Predicated region
        $region41: #{tpu_custom_call.1} parent=39 // pred_check
          %p285 = pneg %p44
        $region42: #{tpu_custom_call.1} parent=39 // pred_check_branch
          %287 = sbr.rel (%p285) target = $region44
        $region43: #{tpu_custom_call.1} parent=39 // pred_region
          %s288 = sand.u32 %s34, 1
          %s289 = scalar_lea.sflag [#allocation3], %s288
          %s290 = sand.u32 %s34, 1
          %s291 = smul.addr %s290, 8
          %s292 = scalar_lea.vmem [#allocation2], %s291
          %s294 = ssub.s32 128, 128
          %295 = vsyncadd %s289, %s294
          %s296 = smul.addr %s24, 2
          %s297 = smul.addr %s296, 64
          %s298 = scalar_lea.hbm %s0, %s297
          %s299 = sshll.u32 %s292, 4
          %s300 = int_to_ptr.vmem [resolvable:$true] %s299
          %305 = dma.hbm_to_vmem [thread:$0]  %s298, 128, %s300, %s289, 64, 64, 4
        $region44: #{tpu_custom_call.1} parent=39 // pred_fallthru
          _
        // Predicated region
        $region45: #{tpu_custom_call.1} parent=39 // pred_check
          %p306 = pneg %p70
        $region46: #{tpu_custom_call.1} parent=39 // pred_check_branch
          %308 = sbr.rel (%p306) target = $region48
        $region47: #{tpu_custom_call.1} parent=39 // pred_region
          %s309 = sand.u32 %s24, 1
          %s310 = scalar_lea.sflag [#allocation6], %s309
          %s311 = sand.u32 %s60, 1
          %s312 = smul.addr %s311, 8
          %s313 = scalar_lea.vmem [#allocation5], %s312
          %s315 = ssub.s32 128, 128
          %316 = vsyncadd %s310, %s315
          %s317 = smul.addr %s24, 2
          %s318 = smul.addr %s317, 64
          %s319 = scalar_lea.hbm %s1, %s318
          %s320 = sshll.u32 %s313, 4
          %s321 = int_to_ptr.vmem [resolvable:$true] %s320
          %326 = dma.hbm_to_vmem [thread:$0]  %s319, 128, %s321, %s310, 64, 64, 4
        $region48: #{tpu_custom_call.1} parent=39 // pred_fallthru
          _
      $region40: #{tpu_custom_call.1} parent=5 // pred_fallthru
        _
      %p327 = scmp.le.s32.totalorder 1, %s24
      %p328 = scmp.lt.s32.totalorder %s24, 3
      %p329 = pnand %p327, %p328
      %p330 = pneg %p329
      // Predicated region
      $region49: #{tpu_custom_call.1} parent=5 // pred_check
        _
      $region50: #{tpu_custom_call.1} parent=5 // pred_check_branch
        %332 = sbr.rel (%p329) target = $region52
      $region51: #{tpu_custom_call.1} parent=5 // pred_region
        %s333 = ssub.s32 %s24, 1
        %s334 = sand.u32 %s37, 1
        %s335 = scalar_lea.sflag [#allocation3], %s334
        %s336 = sand.u32 %s37, 1
        %s337 = smul.addr %s336, 8
        %s338 = scalar_lea.vmem [#allocation2], %s337
        // Predicated region
        $region53: #{tpu_custom_call.1} parent=51 // pred_check
          %p339 = pneg %p50
        $region54: #{tpu_custom_call.1} parent=51 // pred_check_branch
          %341 = sbr.rel (%p339) target = $region56
        $region55: #{tpu_custom_call.1} parent=51 // pred_region
          %342 = dma.done %s335, 128
        $region56: #{tpu_custom_call.1} parent=51 // pred_fallthru
          _
        %s343 = sand.u32 %s29, 1
        %s344 = scalar_lea.sflag [#allocation6], %s343
        %s345 = sand.u32 %s63, 1
        %s346 = smul.addr %s345, 8
        %s347 = scalar_lea.vmem [#allocation5], %s346
        // Predicated region
        $region57: #{tpu_custom_call.1} parent=51 // pred_check
          %p348 = pneg %p76
        $region58: #{tpu_custom_call.1} parent=51 // pred_check_branch
          %350 = sbr.rel (%p348) target = $region60
        $region59: #{tpu_custom_call.1} parent=51 // pred_region
          %351 = dma.done %s344, 128
        $region60: #{tpu_custom_call.1} parent=51 // pred_fallthru
          _
        // Predicated region
        $region61: #{tpu_custom_call.1} parent=51 // pred_check
          %p352 = pneg %p97
        $region62: #{tpu_custom_call.1} parent=51 // pred_check_branch
          %354 = sbr.rel (%p352) target = $region64
        $region63: #{tpu_custom_call.1} parent=51 // pred_region
          %355 = dma.done [#allocation6], 3072
        $region64: #{tpu_custom_call.1} parent=51 // pred_fallthru
          _
        // Predicated region
        $region65: #{tpu_custom_call.1} parent=51 // pred_check
          %p356 = pneg %p160
        $region66: #{tpu_custom_call.1} parent=51 // pred_check_branch
          %358 = sbr.rel (%p356) target = $region68
        $region67: #{tpu_custom_call.1} parent=51 // pred_region
          %359 = dma.done [#allocation9], 3072
        $region68: #{tpu_custom_call.1} parent=51 // pred_fallthru
          _
        %s360 = sand.u32 %s37, 1
        %s361 = scalar_lea.sflag [#allocation3], %s360
        %s362 = sand.u32 %s37, 1
        %s363 = smul.addr %s362, 8
        %s364 = scalar_lea.vmem [#allocation2], %s363
        %p365 = pneg %p50
        %p366 = pneg %p47
        %s367 = sand.u32 %s29, 1
        %s368 = scalar_lea.sflag [#allocation6], %s367
        %s369 = sand.u32 %s63, 1
        %s370 = smul.addr %s369, 8
        %s371 = scalar_lea.vmem [#allocation5], %s370
        %p372 = pneg %p76
        %p373 = pneg %p73
        %p374 = pneg %p97
        %p375 = pneg %p94
        %p376 = pneg %p118
        %p377 = pneg %p115
        %p378 = pneg %p139
        %p379 = pneg %p136
        %p380 = pneg %p160
        %p381 = pneg %p157
        %p382 = pneg %p181
        %p383 = pneg %p178
        %p384 = pneg %p202
        %p385 = pneg %p199
        %p386 = pneg %p228
        %p387 = pneg %p225
        %s388 = sand.u32 %s215, 1
        %s389 = scalar_lea.sflag [#allocation4], %s388
        %s390 = sand.u32 %s215, 1
        %s391 = smul.addr %s390, 16
        %s392 = scalar_lea.vmem [#allocation10], %s391
        %v394 = vld [vmem:[%s338] sm:$0xf]
        %v395 = vld [vmem:[%s338 + $0x4] sm:$0xf]
        %v396 = vld [vmem:[%s347] sm:$0xf]
        %v397 = vld [vmem:[%s347 + $0x4] sm:$0xf]
        %v400 = vunpack.c.l.b16 %v394
        %v401 = vunpack.c.l.b16 %v395
        %v402 = vpack.c.b16 %v401, %v400
        %v405 = vunpack.c.l.b16 %v396
        %v406 = vunpack.c.l.b16 %v397
        %v407 = vpack.c.b16 %v406, %v405
        %408 = vrot.lane.b32.xlu0 %v407, 64
        %v409 = vpop.permute.xlu0 %408
        %vm410 = vcmask 523264
        %v413 = vsel %vm410, %v402, %v409
        %v415 = vshrl.u32 %v413, 16
        %v417 = vrot.slane %v415, 7
        %v418 = vshll.u32 %v413, 16
        %v420 = vor.u32 %v417, %v418
        %vm422 = vcmask 1040384
        %vm423 = vsmask.f32 256
        %vm424 = vmand %vm422, %vm423
        %v425 = vsel %vm424, 0, %v420
        %v426 = vld [vmem:[#allocation7] sm:$0xf]
        %v427 = vld [vmem:[#allocation7 + $0x4] sm:$0xf]
        %v428 = vld [vmem:[#allocation7 + $0x8] sm:$0xf]
        %v429 = vld [vmem:[#allocation7 + $0xc] sm:$0xf]
        %v430 = vld [vmem:[#allocation7 + $0x10] sm:$0xf]
        %v431 = vld [vmem:[#allocation7 + $0x14] sm:$0xf]
        %v432 = vld [vmem:[#allocation7 + $0x18] sm:$0xf]
        %v433 = vld [vmem:[#allocation7 + $0x1c] sm:$0xf]
        %v434 = vld [vmem:[#allocation7 + $0x20] sm:$0xf]
        %v435 = vld [vmem:[#allocation7 + $0x24] sm:$0xf]
        %v436 = vld [vmem:[#allocation7 + $0x28] sm:$0xf]
        %v437 = vld [vmem:[#allocation7 + $0x2c] sm:$0xf]
        %v438 = vld [vmem:[#allocation7 + $0x30] sm:$0xf]
        %v439 = vld [vmem:[#allocation7 + $0x34] sm:$0xf]
        %v440 = vld [vmem:[#allocation7 + $0x38] sm:$0xf]
        %v441 = vld [vmem:[#allocation7 + $0x3c] sm:$0xf]
        %s442 = scalar_lea.vmem [#allocation7], 64
        %v443 = vld [vmem:[%s442] sm:$0xf]
        %v444 = vld [vmem:[%s442 + $0x4] sm:$0xf]
        %v445 = vld [vmem:[%s442 + $0x8] sm:$0xf]
        %v446 = vld [vmem:[%s442 + $0xc] sm:$0xf]
        %v447 = vld [vmem:[%s442 + $0x10] sm:$0xf]
        %v448 = vld [vmem:[%s442 + $0x14] sm:$0xf]
        %v449 = vld [vmem:[%s442 + $0x18] sm:$0xf]
        %v450 = vld [vmem:[%s442 + $0x1c] sm:$0xf]
        %v451 = vld [vmem:[%s442 + $0x20] sm:$0xf]
        %v452 = vld [vmem:[%s442 + $0x24] sm:$0xf]
        %v453 = vld [vmem:[%s442 + $0x28] sm:$0xf]
        %v454 = vld [vmem:[%s442 + $0x2c] sm:$0xf]
        %v455 = vld [vmem:[%s442 + $0x30] sm:$0xf]
        %v456 = vld [vmem:[%s442 + $0x34] sm:$0xf]
        %v457 = vld [vmem:[%s442 + $0x38] sm:$0xf]
        %v458 = vld [vmem:[%s442 + $0x3c] sm:$0xf]
        %v475 = vunpack.c.l.b16 %v443
        %v476 = vunpack.c.l.b16 %v444
        %v477 = vunpack.c.l.b16 %v445
        %v478 = vunpack.c.l.b16 %v446
        %v479 = vunpack.c.l.b16 %v447
        %v480 = vunpack.c.l.b16 %v448
        %v481 = vunpack.c.l.b16 %v449
        %v482 = vunpack.c.l.b16 %v450
        %v483 = vunpack.c.l.b16 %v451
        %v484 = vunpack.c.l.b16 %v452
        %v485 = vunpack.c.l.b16 %v453
        %v486 = vunpack.c.l.b16 %v454
        %v487 = vunpack.c.l.b16 %v455
        %v488 = vunpack.c.l.b16 %v456
        %v489 = vunpack.c.l.b16 %v457
        %v490 = vunpack.c.l.b16 %v458
        %v491 = vpack.c.b16 %v476, %v475
        %v492 = vpack.c.b16 %v478, %v477
        %v493 = vpack.c.b16 %v480, %v479
        %v494 = vpack.c.b16 %v482, %v481
        %v495 = vpack.c.b16 %v484, %v483
        %v496 = vpack.c.b16 %v486, %v485
        %v497 = vpack.c.b16 %v488, %v487
        %v498 = vpack.c.b16 %v490, %v489
        %507 = vmatprep.subr.bf16.mxu0 0
        %508 = vmatpush1.bf16.msra.mxu0 %v498
        %509 = vmatprep.subr.bf16.mxu0 0
        %510 = vmatpush1.bf16.msra.mxu0 %v497
        %511 = vmatprep.subr.bf16.mxu0 0
        %512 = vmatpush1.bf16.msra.mxu0 %v496
        %513 = vmatprep.subr.bf16.mxu0 0
        %514 = vmatpush1.bf16.msra.mxu0 %v495
        %515 = vmatprep.subr.bf16.mxu0 0
        %516 = vmatpush1.bf16.msra.mxu0 %v494
        %517 = vmatprep.subr.bf16.mxu0 0
        %518 = vmatpush1.bf16.msra.mxu0 %v493
        %519 = vmatprep.subr.bf16.mxu0 0
        %520 = vmatpush1.bf16.msra.mxu0 %v492
        %521 = vmatprep.subr.bf16.mxu0 0
        %522 = vmatpush1.bf16.msra.mxu0 %v491
        %523 = vmatprep.subr.bf16.mxu0 0
        %524 = vmatpush2.bf16.msra.mxu0 0
        %525 = vmatprep.subr.bf16.mxu0 0
        %526 = vmatpush2.bf16.msra.mxu0 0
        %527 = vmatprep.subr.bf16.mxu0 0
        %528 = vmatpush2.bf16.msra.mxu0 0
        %529 = vmatprep.subr.bf16.mxu0 0
        %530 = vmatpush2.bf16.msra.mxu0 0
        %531 = vmatprep.subr.bf16.mxu0 0
        %532 = vmatpush2.bf16.msra.mxu0 0
        %533 = vmatprep.subr.bf16.mxu0 0
        %534 = vmatpush2.bf16.msra.mxu0 0
        %535 = vmatprep.subr.bf16.mxu0 0
        %536 = vmatpush2.bf16.msra.mxu0 0
        %537 = vmatprep.subr.bf16.mxu0 0
        %538 = vmatpush2.bf16.msra.mxu0 0
        %539 = vmatprep.mubr.bf16.mxu0 0
        %540 = vmatmul.mubr.bf16.gmra.mxu0 %v413
        %v541 = vpop.f32.mrf.mxu0
        %v542 = vadd.f32 0.0, %v541
        %v543 = vpop.f32.mrf.mxu0
        %v544 = vpop.f32.mrf.mxu0
        %v545 = vadd.f32 0.0, %v544
        %v546 = vpop.f32.mrf.mxu0
        %547 = vdwg.mxu0
        %v564 = vunpack.c.l.b16 %v426
        %v565 = vunpack.c.l.b16 %v427
        %v566 = vunpack.c.l.b16 %v428
        %v567 = vunpack.c.l.b16 %v429
        %v568 = vunpack.c.l.b16 %v430
        %v569 = vunpack.c.l.b16 %v431
        %v570 = vunpack.c.l.b16 %v432
        %v571 = vunpack.c.l.b16 %v433
        %v572 = vunpack.c.l.b16 %v434
        %v573 = vunpack.c.l.b16 %v435
        %v574 = vunpack.c.l.b16 %v436
        %v575 = vunpack.c.l.b16 %v437
        %v576 = vunpack.c.l.b16 %v438
        %v577 = vunpack.c.l.b16 %v439
        %v578 = vunpack.c.l.b16 %v440
        %v579 = vunpack.c.l.b16 %v441
        %v580 = vpack.c.b16 %v565, %v564
        %v581 = vpack.c.b16 %v567, %v566
        %v582 = vpack.c.b16 %v569, %v568
        %v583 = vpack.c.b16 %v571, %v570
        %v584 = vpack.c.b16 %v573, %v572
        %v585 = vpack.c.b16 %v575, %v574
        %v586 = vpack.c.b16 %v577, %v576
        %v587 = vpack.c.b16 %v579, %v578
        %596 = vmatprep.subr.bf16.mxu0 0
        %597 = vmatpush1.bf16.msra.mxu0 %v587
        %598 = vmatprep.subr.bf16.mxu0 0
        %599 = vmatpush1.bf16.msra.mxu0 %v586
        %600 = vmatprep.subr.bf16.mxu0 0
        %601 = vmatpush1.bf16.msra.mxu0 %v585
        %602 = vmatprep.subr.bf16.mxu0 0
        %603 = vmatpush1.bf16.msra.mxu0 %v584
        %604 = vmatprep.subr.bf16.mxu0 0
        %605 = vmatpush1.bf16.msra.mxu0 %v583
        %606 = vmatprep.subr.bf16.mxu0 0
        %607 = vmatpush1.bf16.msra.mxu0 %v582
        %608 = vmatprep.subr.bf16.mxu0 0
        %609 = vmatpush1.bf16.msra.mxu0 %v581
        %610 = vmatprep.subr.bf16.mxu0 0
        %611 = vmatpush1.bf16.msra.mxu0 %v580
        %612 = vmatprep.subr.bf16.mxu0 0
        %613 = vmatpush2.bf16.msra.mxu0 0
        %614 = vmatprep.subr.bf16.mxu0 0
        %615 = vmatpush2.bf16.msra.mxu0 0
        %616 = vmatprep.subr.bf16.mxu0 0
        %617 = vmatpush2.bf16.msra.mxu0 0
        %618 = vmatprep.subr.bf16.mxu0 0
        %619 = vmatpush2.bf16.msra.mxu0 0
        %620 = vmatprep.subr.bf16.mxu0 0
        %621 = vmatpush2.bf16.msra.mxu0 0
        %622 = vmatprep.subr.bf16.mxu0 0
        %623 = vmatpush2.bf16.msra.mxu0 0
        %624 = vmatprep.subr.bf16.mxu0 0
        %625 = vmatpush2.bf16.msra.mxu0 0
        %626 = vmatprep.subr.bf16.mxu0 0
        %627 = vmatpush2.bf16.msra.mxu0 0
        %628 = vmatprep.mubr.bf16.mxu0 0
        %629 = vmatmul.mubr.bf16.gmra.mxu0 %v425
        %v630 = vpop.f32.mrf.mxu0
        %v631 = vadd.f32 %v542, %v630
        %v632 = vpop.f32.mrf.mxu0
        %v633 = vpop.f32.mrf.mxu0
        %v634 = vadd.f32 %v545, %v633
        %v635 = vpop.f32.mrf.mxu0
        %636 = vdwg.mxu0
        %v637 = vrot.slane %v418, 1
        %v638 = vor.u32 %v415, %v637
        %vm640 = vcmask 1047552
        %vm641 = vsmask.f32 7424
        %vm642 = vmand %vm640, %vm641
        %v643 = vsel %vm642, %v638, 0
        %s644 = scalar_lea.vmem [#allocation7], 128
        %v645 = vld [vmem:[%s644] sm:$0xf]
        %v646 = vld [vmem:[%s644 + $0x4] sm:$0xf]
        %v647 = vld [vmem:[%s644 + $0x8] sm:$0xf]
        %v648 = vld [vmem:[%s644 + $0xc] sm:$0xf]
        %v649 = vld [vmem:[%s644 + $0x10] sm:$0xf]
        %v650 = vld [vmem:[%s644 + $0x14] sm:$0xf]
        %v651 = vld [vmem:[%s644 + $0x18] sm:$0xf]
        %v652 = vld [vmem:[%s644 + $0x1c] sm:$0xf]
        %v653 = vld [vmem:[%s644 + $0x20] sm:$0xf]
        %v654 = vld [vmem:[%s644 + $0x24] sm:$0xf]
        %v655 = vld [vmem:[%s644 + $0x28] sm:$0xf]
        %v656 = vld [vmem:[%s644 + $0x2c] sm:$0xf]
        %v657 = vld [vmem:[%s644 + $0x30] sm:$0xf]
        %v658 = vld [vmem:[%s644 + $0x34] sm:$0xf]
        %v659 = vld [vmem:[%s644 + $0x38] sm:$0xf]
        %v660 = vld [vmem:[%s644 + $0x3c] sm:$0xf]
        %v677 = vunpack.c.l.b16 %v645
        %v678 = vunpack.c.l.b16 %v646
        %v679 = vunpack.c.l.b16 %v647
        %v680 = vunpack.c.l.b16 %v648
        %v681 = vunpack.c.l.b16 %v649
        %v682 = vunpack.c.l.b16 %v650
        %v683 = vunpack.c.l.b16 %v651
        %v684 = vunpack.c.l.b16 %v652
        %v685 = vunpack.c.l.b16 %v653
        %v686 = vunpack.c.l.b16 %v654
        %v687 = vunpack.c.l.b16 %v655
        %v688 = vunpack.c.l.b16 %v656
        %v689 = vunpack.c.l.b16 %v657
        %v690 = vunpack.c.l.b16 %v658
        %v691 = vunpack.c.l.b16 %v659
        %v692 = vunpack.c.l.b16 %v660
        %v693 = vpack.c.b16 %v678, %v677
        %v694 = vpack.c.b16 %v680, %v679
        %v695 = vpack.c.b16 %v682, %v681
        %v696 = vpack.c.b16 %v684, %v683
        %v697 = vpack.c.b16 %v686, %v685
        %v698 = vpack.c.b16 %v688, %v687
        %v699 = vpack.c.b16 %v690, %v689
        %v700 = vpack.c.b16 %v692, %v691
        %709 = vmatprep.subr.bf16.mxu0 0
        %710 = vmatpush1.bf16.msra.mxu0 %v700
        %711 = vmatprep.subr.bf16.mxu0 0
        %712 = vmatpush1.bf16.msra.mxu0 %v699
        %713 = vmatprep.subr.bf16.mxu0 0
        %714 = vmatpush1.bf16.msra.mxu0 %v698
        %715 = vmatprep.subr.bf16.mxu0 0
        %716 = vmatpush1.bf16.msra.mxu0 %v697
        %717 = vmatprep.subr.bf16.mxu0 0
        %718 = vmatpush1.bf16.msra.mxu0 %v696
        %719 = vmatprep.subr.bf16.mxu0 0
        %720 = vmatpush1.bf16.msra.mxu0 %v695
        %721 = vmatprep.subr.bf16.mxu0 0
        %722 = vmatpush1.bf16.msra.mxu0 %v694
        %723 = vmatprep.subr.bf16.mxu0 0
        %724 = vmatpush1.bf16.msra.mxu0 %v693
        %725 = vmatprep.subr.bf16.mxu0 0
        %726 = vmatpush2.bf16.msra.mxu0 0
        %727 = vmatprep.subr.bf16.mxu0 0
        %728 = vmatpush2.bf16.msra.mxu0 0
        %729 = vmatprep.subr.bf16.mxu0 0
        %730 = vmatpush2.bf16.msra.mxu0 0
        %731 = vmatprep.subr.bf16.mxu0 0
        %732 = vmatpush2.bf16.msra.mxu0 0
        %733 = vmatprep.subr.bf16.mxu0 0
        %734 = vmatpush2.bf16.msra.mxu0 0
        %735 = vmatprep.subr.bf16.mxu0 0
        %736 = vmatpush2.bf16.msra.mxu0 0
        %737 = vmatprep.subr.bf16.mxu0 0
        %738 = vmatpush2.bf16.msra.mxu0 0
        %739 = vmatprep.subr.bf16.mxu0 0
        %740 = vmatpush2.bf16.msra.mxu0 0
        %741 = vmatprep.mubr.bf16.mxu0 0
        %742 = vmatmul.mubr.bf16.gmra.mxu0 %v643
        %v743 = vpop.f32.mrf.mxu0
        %v744 = vadd.f32 0.0, %v743
        %v745 = vpop.f32.mrf.mxu0
        %v746 = vpop.f32.mrf.mxu0
        %v747 = vadd.f32 0.0, %v746
        %v748 = vpop.f32.mrf.mxu0
        %749 = vdwg.mxu0
        %v750 = vadd.f32 %v631, %v744
        %v751 = vadd.f32 %v634, %v747
        %v752 = vld [vmem:[%s3] sm:$0x1]
        %v754 = vlaneseq
        %v755 = vshrl.u32 %v754, 7
        %v756 = vsub.s32 0, %v755
        %v757 = vrot.slane %v752, %v756
        %v759 = vmul.f32 %v750, %v757
        %v760 = vmul.f32 %v751, %v757
        %v761 = vld [vmem:[%s4] sm:$0x1]
        %v763 = vlaneseq
        %v764 = vshrl.u32 %v763, 7
        %v765 = vsub.s32 0, %v764
        %v766 = vrot.slane %v761, %v765
        %v768 = vadd.f32 %v759, %v766
        %v769 = vadd.f32 %v760, %v766
        %v770 = vmax.f32 %v768, 0.0
        %v771 = vmax.f32 %v769, 0.0
        %v772 = vpack.c.bf16 %v771, %v770
        %v774 = vshrl.u32 %v772, 16
        %v776 = vrot.slane %v774, 7
        %v777 = vshll.u32 %v772, 16
        %v779 = vor.u32 %v776, %v777
        %v781 = vsel %vm424, 0, %v779
        %v782 = vld [vmem:[#allocation8] sm:$0xf]
        %v783 = vld [vmem:[#allocation8 + $0x4] sm:$0xf]
        %v784 = vld [vmem:[#allocation8 + $0x8] sm:$0xf]
        %v785 = vld [vmem:[#allocation8 + $0xc] sm:$0xf]
        %v786 = vld [vmem:[#allocation8 + $0x10] sm:$0xf]
        %v787 = vld [vmem:[#allocation8 + $0x14] sm:$0xf]
        %v788 = vld [vmem:[#allocation8 + $0x18] sm:$0xf]
        %v789 = vld [vmem:[#allocation8 + $0x1c] sm:$0xf]
        %v790 = vld [vmem:[#allocation8 + $0x20] sm:$0xf]
        %v791 = vld [vmem:[#allocation8 + $0x24] sm:$0xf]
        %v792 = vld [vmem:[#allocation8 + $0x28] sm:$0xf]
        %v793 = vld [vmem:[#allocation8 + $0x2c] sm:$0xf]
        %v794 = vld [vmem:[#allocation8 + $0x30] sm:$0xf]
        %v795 = vld [vmem:[#allocation8 + $0x34] sm:$0xf]
        %v796 = vld [vmem:[#allocation8 + $0x38] sm:$0xf]
        %v797 = vld [vmem:[#allocation8 + $0x3c] sm:$0xf]
        %s798 = scalar_lea.vmem [#allocation8], 64
        %v799 = vld [vmem:[%s798] sm:$0xf]
        %v800 = vld [vmem:[%s798 + $0x4] sm:$0xf]
        %v801 = vld [vmem:[%s798 + $0x8] sm:$0xf]
        %v802 = vld [vmem:[%s798 + $0xc] sm:$0xf]
        %v803 = vld [vmem:[%s798 + $0x10] sm:$0xf]
        %v804 = vld [vmem:[%s798 + $0x14] sm:$0xf]
        %v805 = vld [vmem:[%s798 + $0x18] sm:$0xf]
        %v806 = vld [vmem:[%s798 + $0x1c] sm:$0xf]
        %v807 = vld [vmem:[%s798 + $0x20] sm:$0xf]
        %v808 = vld [vmem:[%s798 + $0x24] sm:$0xf]
        %v809 = vld [vmem:[%s798 + $0x28] sm:$0xf]
        %v810 = vld [vmem:[%s798 + $0x2c] sm:$0xf]
        %v811 = vld [vmem:[%s798 + $0x30] sm:$0xf]
        %v812 = vld [vmem:[%s798 + $0x34] sm:$0xf]
        %v813 = vld [vmem:[%s798 + $0x38] sm:$0xf]
        %v814 = vld [vmem:[%s798 + $0x3c] sm:$0xf]
        %v831 = vunpack.c.l.b16 %v799
        %v832 = vunpack.c.l.b16 %v800
        %v833 = vunpack.c.l.b16 %v801
        %v834 = vunpack.c.l.b16 %v802
        %v835 = vunpack.c.l.b16 %v803
        %v836 = vunpack.c.l.b16 %v804
        %v837 = vunpack.c.l.b16 %v805
        %v838 = vunpack.c.l.b16 %v806
        %v839 = vunpack.c.l.b16 %v807
        %v840 = vunpack.c.l.b16 %v808
        %v841 = vunpack.c.l.b16 %v809
        %v842 = vunpack.c.l.b16 %v810
        %v843 = vunpack.c.l.b16 %v811
        %v844 = vunpack.c.l.b16 %v812
        %v845 = vunpack.c.l.b16 %v813
        %v846 = vunpack.c.l.b16 %v814
        %v847 = vpack.c.b16 %v832, %v831
        %v848 = vpack.c.b16 %v834, %v833
        %v849 = vpack.c.b16 %v836, %v835
        %v850 = vpack.c.b16 %v838, %v837
        %v851 = vpack.c.b16 %v840, %v839
        %v852 = vpack.c.b16 %v842, %v841
        %v853 = vpack.c.b16 %v844, %v843
        %v854 = vpack.c.b16 %v846, %v845
        %863 = vmatprep.subr.bf16.mxu0 0
        %864 = vmatpush1.bf16.msra.mxu0 %v854
        %865 = vmatprep.subr.bf16.mxu0 0
        %866 = vmatpush1.bf16.msra.mxu0 %v853
        %867 = vmatprep.subr.bf16.mxu0 0
        %868 = vmatpush1.bf16.msra.mxu0 %v852
        %869 = vmatprep.subr.bf16.mxu0 0
        %870 = vmatpush1.bf16.msra.mxu0 %v851
        %871 = vmatprep.subr.bf16.mxu0 0
        %872 = vmatpush1.bf16.msra.mxu0 %v850
        %873 = vmatprep.subr.bf16.mxu0 0
        %874 = vmatpush1.bf16.msra.mxu0 %v849
        %875 = vmatprep.subr.bf16.mxu0 0
        %876 = vmatpush1.bf16.msra.mxu0 %v848
        %877 = vmatprep.subr.bf16.mxu0 0
        %878 = vmatpush1.bf16.msra.mxu0 %v847
        %879 = vmatprep.subr.bf16.mxu0 0
        %880 = vmatpush2.bf16.msra.mxu0 0
        %881 = vmatprep.subr.bf16.mxu0 0
        %882 = vmatpush2.bf16.msra.mxu0 0
        %883 = vmatprep.subr.bf16.mxu0 0
        %884 = vmatpush2.bf16.msra.mxu0 0
        %885 = vmatprep.subr.bf16.mxu0 0
        %886 = vmatpush2.bf16.msra.mxu0 0
        %887 = vmatprep.subr.bf16.mxu0 0
        %888 = vmatpush2.bf16.msra.mxu0 0
        %889 = vmatprep.subr.bf16.mxu0 0
        %890 = vmatpush2.bf16.msra.mxu0 0
        %891 = vmatprep.subr.bf16.mxu0 0
        %892 = vmatpush2.bf16.msra.mxu0 0
        %893 = vmatprep.subr.bf16.mxu0 0
        %894 = vmatpush2.bf16.msra.mxu0 0
        %895 = vmatprep.mubr.bf16.mxu0 0
        %896 = vmatmul.mubr.bf16.gmra.mxu0 %v772
        %v897 = vpop.f32.mrf.mxu0
        %v898 = vadd.f32 0.0, %v897
        %v899 = vpop.f32.mrf.mxu0
        %v900 = vpop.f32.mrf.mxu0
        %v901 = vadd.f32 0.0, %v900
        %v902 = vpop.f32.mrf.mxu0
        %903 = vdwg.mxu0
        %v920 = vunpack.c.l.b16 %v782
        %v921 = vunpack.c.l.b16 %v783
        %v922 = vunpack.c.l.b16 %v784
        %v923 = vunpack.c.l.b16 %v785
        %v924 = vunpack.c.l.b16 %v786
        %v925 = vunpack.c.l.b16 %v787
        %v926 = vunpack.c.l.b16 %v788
        %v927 = vunpack.c.l.b16 %v789
        %v928 = vunpack.c.l.b16 %v790
        %v929 = vunpack.c.l.b16 %v791
        %v930 = vunpack.c.l.b16 %v792
        %v931 = vunpack.c.l.b16 %v793
        %v932 = vunpack.c.l.b16 %v794
        %v933 = vunpack.c.l.b16 %v795
        %v934 = vunpack.c.l.b16 %v796
        %v935 = vunpack.c.l.b16 %v797
        %v936 = vpack.c.b16 %v921, %v920
        %v937 = vpack.c.b16 %v923, %v922
        %v938 = vpack.c.b16 %v925, %v924
        %v939 = vpack.c.b16 %v927, %v926
        %v940 = vpack.c.b16 %v929, %v928
        %v941 = vpack.c.b16 %v931, %v930
        %v942 = vpack.c.b16 %v933, %v932
        %v943 = vpack.c.b16 %v935, %v934
        %952 = vmatprep.subr.bf16.mxu0 0
        %953 = vmatpush1.bf16.msra.mxu0 %v943
        %954 = vmatprep.subr.bf16.mxu0 0
        %955 = vmatpush1.bf16.msra.mxu0 %v942
        %956 = vmatprep.subr.bf16.mxu0 0
        %957 = vmatpush1.bf16.msra.mxu0 %v941
        %958 = vmatprep.subr.bf16.mxu0 0
        %959 = vmatpush1.bf16.msra.mxu0 %v940
        %960 = vmatprep.subr.bf16.mxu0 0
        %961 = vmatpush1.bf16.msra.mxu0 %v939
        %962 = vmatprep.subr.bf16.mxu0 0
        %963 = vmatpush1.bf16.msra.mxu0 %v938
        %964 = vmatprep.subr.bf16.mxu0 0
        %965 = vmatpush1.bf16.msra.mxu0 %v937
        %966 = vmatprep.subr.bf16.mxu0 0
        %967 = vmatpush1.bf16.msra.mxu0 %v936
        %968 = vmatprep.subr.bf16.mxu0 0
        %969 = vmatpush2.bf16.msra.mxu0 0
        %970 = vmatprep.subr.bf16.mxu0 0
        %971 = vmatpush2.bf16.msra.mxu0 0
        %972 = vmatprep.subr.bf16.mxu0 0
        %973 = vmatpush2.bf16.msra.mxu0 0
        %974 = vmatprep.subr.bf16.mxu0 0
        %975 = vmatpush2.bf16.msra.mxu0 0
        %976 = vmatprep.subr.bf16.mxu0 0
        %977 = vmatpush2.bf16.msra.mxu0 0
        %978 = vmatprep.subr.bf16.mxu0 0
        %979 = vmatpush2.bf16.msra.mxu0 0
        %980 = vmatprep.subr.bf16.mxu0 0
        %981 = vmatpush2.bf16.msra.mxu0 0
        %982 = vmatprep.subr.bf16.mxu0 0
        %983 = vmatpush2.bf16.msra.mxu0 0
        %984 = vmatprep.mubr.bf16.mxu0 0
        %985 = vmatmul.mubr.bf16.gmra.mxu0 %v781
        %v986 = vpop.f32.mrf.mxu0
        %v987 = vadd.f32 %v898, %v986
        %v988 = vpop.f32.mrf.mxu0
        %v989 = vpop.f32.mrf.mxu0
        %v990 = vadd.f32 %v901, %v989
        %v991 = vpop.f32.mrf.mxu0
        %992 = vdwg.mxu0
        %v993 = vrot.slane %v777, 1
        %v994 = vor.u32 %v774, %v993
        %v996 = vsel %vm642, %v994, 0
        %s997 = scalar_lea.vmem [#allocation8], 128
        %v998 = vld [vmem:[%s997] sm:$0xf]
        %v999 = vld [vmem:[%s997 + $0x4] sm:$0xf]
        %v1000 = vld [vmem:[%s997 + $0x8] sm:$0xf]
        %v1001 = vld [vmem:[%s997 + $0xc] sm:$0xf]
        %v1002 = vld [vmem:[%s997 + $0x10] sm:$0xf]
        %v1003 = vld [vmem:[%s997 + $0x14] sm:$0xf]
        %v1004 = vld [vmem:[%s997 + $0x18] sm:$0xf]
        %v1005 = vld [vmem:[%s997 + $0x1c] sm:$0xf]
        %v1006 = vld [vmem:[%s997 + $0x20] sm:$0xf]
        %v1007 = vld [vmem:[%s997 + $0x24] sm:$0xf]
        %v1008 = vld [vmem:[%s997 + $0x28] sm:$0xf]
        %v1009 = vld [vmem:[%s997 + $0x2c] sm:$0xf]
        %v1010 = vld [vmem:[%s997 + $0x30] sm:$0xf]
        %v1011 = vld [vmem:[%s997 + $0x34] sm:$0xf]
        %v1012 = vld [vmem:[%s997 + $0x38] sm:$0xf]
        %v1013 = vld [vmem:[%s997 + $0x3c] sm:$0xf]
        %v1030 = vunpack.c.l.b16 %v998
        %v1031 = vunpack.c.l.b16 %v999
        %v1032 = vunpack.c.l.b16 %v1000
        %v1033 = vunpack.c.l.b16 %v1001
        %v1034 = vunpack.c.l.b16 %v1002
        %v1035 = vunpack.c.l.b16 %v1003
        %v1036 = vunpack.c.l.b16 %v1004
        %v1037 = vunpack.c.l.b16 %v1005
        %v1038 = vunpack.c.l.b16 %v1006
        %v1039 = vunpack.c.l.b16 %v1007
        %v1040 = vunpack.c.l.b16 %v1008
        %v1041 = vunpack.c.l.b16 %v1009
        %v1042 = vunpack.c.l.b16 %v1010
        %v1043 = vunpack.c.l.b16 %v1011
        %v1044 = vunpack.c.l.b16 %v1012
        %v1045 = vunpack.c.l.b16 %v1013
        %v1046 = vpack.c.b16 %v1031, %v1030
        %v1047 = vpack.c.b16 %v1033, %v1032
        %v1048 = vpack.c.b16 %v1035, %v1034
        %v1049 = vpack.c.b16 %v1037, %v1036
        %v1050 = vpack.c.b16 %v1039, %v1038
        %v1051 = vpack.c.b16 %v1041, %v1040
        %v1052 = vpack.c.b16 %v1043, %v1042
        %v1053 = vpack.c.b16 %v1045, %v1044
        %1062 = vmatprep.subr.bf16.mxu0 0
        %1063 = vmatpush1.bf16.msra.mxu0 %v1053
        %1064 = vmatprep.subr.bf16.mxu0 0
        %1065 = vmatpush1.bf16.msra.mxu0 %v1052
        %1066 = vmatprep.subr.bf16.mxu0 0
        %1067 = vmatpush1.bf16.msra.mxu0 %v1051
        %1068 = vmatprep.subr.bf16.mxu0 0
        %1069 = vmatpush1.bf16.msra.mxu0 %v1050
        %1070 = vmatprep.subr.bf16.mxu0 0
        %1071 = vmatpush1.bf16.msra.mxu0 %v1049
        %1072 = vmatprep.subr.bf16.mxu0 0
        %1073 = vmatpush1.bf16.msra.mxu0 %v1048
        %1074 = vmatprep.subr.bf16.mxu0 0
        %1075 = vmatpush1.bf16.msra.mxu0 %v1047
        %1076 = vmatprep.subr.bf16.mxu0 0
        %1077 = vmatpush1.bf16.msra.mxu0 %v1046
        %1078 = vmatprep.subr.bf16.mxu0 0
        %1079 = vmatpush2.bf16.msra.mxu0 0
        %1080 = vmatprep.subr.bf16.mxu0 0
        %1081 = vmatpush2.bf16.msra.mxu0 0
        %1082 = vmatprep.subr.bf16.mxu0 0
        %1083 = vmatpush2.bf16.msra.mxu0 0
        %1084 = vmatprep.subr.bf16.mxu0 0
        %1085 = vmatpush2.bf16.msra.mxu0 0
        %1086 = vmatprep.subr.bf16.mxu0 0
        %1087 = vmatpush2.bf16.msra.mxu0 0
        %1088 = vmatprep.subr.bf16.mxu0 0
        %1089 = vmatpush2.bf16.msra.mxu0 0
        %1090 = vmatprep.subr.bf16.mxu0 0
        %1091 = vmatpush2.bf16.msra.mxu0 0
        %1092 = vmatprep.subr.bf16.mxu0 0
        %1093 = vmatpush2.bf16.msra.mxu0 0
        %1094 = vmatprep.mubr.bf16.mxu0 0
        %1095 = vmatmul.mubr.bf16.gmra.mxu0 %v996
        %v1096 = vpop.f32.mrf.mxu0
        %v1097 = vadd.f32 0.0, %v1096
        %v1098 = vpop.f32.mrf.mxu0
        %v1099 = vpop.f32.mrf.mxu0
        %v1100 = vadd.f32 0.0, %v1099
        %v1101 = vpop.f32.mrf.mxu0
        %1102 = vdwg.mxu0
        %v1103 = vadd.f32 %v987, %v1097
        %v1104 = vadd.f32 %v990, %v1100
        %v1105 = vld [vmem:[%s6] sm:$0x1]
        %v1107 = vlaneseq
        %v1108 = vshrl.u32 %v1107, 7
        %v1109 = vsub.s32 0, %v1108
        %v1110 = vrot.slane %v1105, %v1109
        %v1112 = vmul.f32 %v1103, %v1110
        %v1113 = vmul.f32 %v1104, %v1110
        %v1114 = vld [vmem:[%s7] sm:$0x1]
        %v1116 = vlaneseq
        %v1117 = vshrl.u32 %v1116, 7
        %v1118 = vsub.s32 0, %v1117
        %v1119 = vrot.slane %v1114, %v1118
        %v1121 = vadd.f32 %v1112, %v1119
        %v1122 = vadd.f32 %v1113, %v1119
        %v1123 = vmax.f32 %v1121, 0.0
        %v1124 = vmax.f32 %v1122, 0.0
        %1125 = vst [vmem:[%s392] sm:$0xff] %v1123
        %1126 = vst [vmem:[%s392 + $0x8] sm:$0xff] %v1124
        %s1127 = sand.u32 %s215, 1
        %s1128 = scalar_lea.sflag [#allocation4], %s1127
        %s1129 = sand.u32 %s215, 1
        %s1130 = smul.addr %s1129, 16
        %s1131 = scalar_lea.vmem [#allocation10], %s1130
        // Predicated region
        $region69: #{tpu_custom_call.1} parent=51 // pred_check
          %p1132 = pneg %p225
        $region70: #{tpu_custom_call.1} parent=51 // pred_check_branch
          %1134 = sbr.rel (%p1132) target = $region72
        $region71: #{tpu_custom_call.1} parent=51 // pred_region
          %s1136 = ssub.s32 256, 256
          %1137 = vsyncadd %s1128, %s1136
          %s1138 = smul.addr %s29, 2
          %s1139 = smul.addr %s1138, 128
          %s1140 = scalar_lea.hbm %s8, %s1139
          %s1141 = sshll.u32 %s1131, 4
          %s1142 = int_to_ptr.vmem [resolvable:$true] %s1141
          %1147 = dma.vmem_to_hbm [thread:$0]  %s1142, 256, %s1140, %s1128, 128, 128, 8
        $region72: #{tpu_custom_call.1} parent=51 // pred_fallthru
          _
      $region52: #{tpu_custom_call.1} parent=5 // pred_fallthru
        _
      %p1148 = scmp.le.s32.totalorder 2, %s24
      // Predicated region
      $region73: #{tpu_custom_call.1} parent=5 // pred_check
        %p1149 = pneg %p1148
      $region74: #{tpu_custom_call.1} parent=5 // pred_check_branch
        %1151 = sbr.rel (%p1149) target = $region76
      $region75: #{tpu_custom_call.1} parent=5 // pred_region
        %s1152 = ssub.s32 %s24, 2
        // Predicated region
        $region77: #{tpu_custom_call.1} parent=75 // pred_check
          %p1153 = pneg %p231
        $region78: #{tpu_custom_call.1} parent=75 // pred_check_branch
          %1155 = sbr.rel (%p1153) target = $region80
        $region79: #{tpu_custom_call.1} parent=75 // pred_region
          %s1156 = sand.u32 %s216, 1
          %s1157 = scalar_lea.sflag [#allocation4], %s1156
          %s1158 = sand.u32 %s216, 1
          %s1159 = smul.addr %s1158, 16
          %s1160 = scalar_lea.vmem [#allocation10], %s1159
          %1161 = dma.done %s1157, 256
        $region80: #{tpu_custom_call.1} parent=75 // pred_fallthru
          _
      $region76: #{tpu_custom_call.1} parent=5 // pred_fallthru
        _
    $region6: #{tpu_custom_call.1} parent=1 // loop_footer
      %s28 = sadd.s32 1, %s24
    $region7: #{tpu_custom_call.1} parent=1 // loop_footer_branch
      %23 = sbr.rel target = $region3
    $region8: #{tpu_custom_call.1} parent=1 // loop_exit
      _
    %1162 = vsyncpa [#allocation3], 1
    %s1163 = scalar_lea.sflag [#allocation3], 1
    %1164 = vsyncpa %s1163, 1
    %1165 = vsyncpa [#allocation6], 1
    %s1166 = scalar_lea.sflag [#allocation6], 1
    %1167 = vsyncpa %s1166, 1
    %1168 = vsyncpa [#allocation9], 1
    %1169 = vsyncpa [#allocation4], 1
    %s1170 = scalar_lea.sflag [#allocation4], 1
    %1171 = vsyncpa %s1170, 1

</llo_original>
